<compile_context>
chip_gen: v7x
topology: tpu7x:2x2x1
jax: 0.10.0
libtpu: 0.0.40
codegen_flags: <defaults>
</compile_context>

<pallas_src>
import jax
import jax.numpy as jnp
from jax.experimental import pallas as pl
from jax.experimental.pallas import tpu as pltpu

_LANE = 128
_SUBLANE = 8
_TARGET_BLOCK_BYTES = 2 * 1024 * 1024  # ~2 MiB per array block


def _copy_kernel(x_ref, o_ref):
    # One lane-dense (block_rows, cols) tile per grid step.
    o_ref[...] = x_ref[...]


def _choose_slab(total_elems: int, feat_dim: int):
    """Pick a lane-dense 2-D slab (rows, cols) with cols a multiple of 128."""
    for cols in (1024, 512, 256, _LANE):
        if total_elems % cols == 0:
            return total_elems // cols, cols
    # Fallback: keep the original feature dim as the (full-extent) last dim.
    return total_elems // feat_dim, feat_dim


def base_encoder_forward(inputs: jax.Array, input_lengths: jax.Array,
                         materialize: bool = True):
    """Pallas implementation of the BaseEncoder interface contract.

    Args:
      inputs:        float (B, T, D)
      input_lengths: int   (B,)
      materialize:   if False, skip the kernel entirely (pure identity).
    Returns:
      (encoder_outputs, encoder_output_lengths, encoder_log_probs=None)
    """
    if not materialize:
        # Highest-value path: the identity contract needs no kernel at all.
        return inputs, input_lengths, None

    B, T, D = inputs.shape
    total = B * T * D
    itemsize = jnp.dtype(inputs.dtype).itemsize

    # Lane-dense 2-D slab.
    rows, cols = _choose_slab(total, D)
    x2d = inputs.reshape(rows, cols)

    # Block rows: multiple of 8, ~2 MiB per block, clamped to the full extent.
    block_rows = (_TARGET_BLOCK_BYTES // (cols * itemsize)) // _SUBLANE * _SUBLANE
    block_rows = max(_SUBLANE, block_rows)
    if block_rows >= rows:
        block_rows = rows  # single full-extent block (always layout-legal)

    grid = (pl.cdiv(rows, block_rows),)

    out2d = pl.pallas_call(
        _copy_kernel,
        out_shape=jax.ShapeDtypeStruct((rows, cols), inputs.dtype),
        grid_spec=pltpu.PrefetchScalarGridSpec(
            num_scalar_prefetch=0,
            grid=grid,
            in_specs=[pl.BlockSpec((block_rows, cols), lambda i: (i, 0))],
            out_specs=pl.BlockSpec((block_rows, cols), lambda i: (i, 0)),
        ),
        compiler_params=pltpu.CompilerParams(
            dimension_semantics=("parallel",),
        ),
        cost_estimate=pl.CostEstimate(
            flops=0,
            transcendentals=0,
            bytes_accessed=2 * total * itemsize,
        ),
    )(x2d)

    outputs = out2d.reshape(B, T, D)
    # Lengths bypass the kernel entirely — no SMEM traffic, no extra output DMA.
    return outputs, input_lengths, None


if __name__ == "__main__":
    key = jax.random.PRNGKey(0)
    k_x, k_len = jax.random.split(key)

    B, T, D = 2, 8, 32  # (batch, seq_length, dimension)
    inputs = jax.random.normal(k_x, (B, T, D), dtype=jnp.float32)
    input_lengths = jax.random.randint(k_len, (B,), minval=1, maxval=T + 1,
                                       dtype=jnp.int32)

    outputs, output_lengths, log_probs = base_encoder_forward(inputs,
                                                              input_lengths)
    jax.block_until_ready((outputs, output_lengths))

    # Interface contract checks: identity pass-through, lengths unchanged,
    # log-probs None (joint_ctc_attention=False).
    assert outputs.shape == (B, T, D)
    assert output_lengths.shape == (B,)
    assert log_probs is None
    assert jnp.allclose(outputs, inputs)
    assert jnp.array_equal(output_lengths, input_lengths)

    print("KERNEL_OK")
</pallas_src>

<mosaic_0001>
module attributes {stable_mosaic.version = 11 : i64} {
  func.func @_copy_kernel(%arg0: i32, %arg1: memref<1x512xf32, #tpu.memory_space<vmem>>, %arg2: memref<1x512xf32, #tpu.memory_space<vmem>>) attributes {dimension_semantics = [#tpu.dimension_semantics<parallel>], iteration_bounds = array<i64: 1>, scalar_prefetch = 0 : i64, scratch_operands = 0 : i64, tpu.core_type = #tpu.core_type<tc>, window_params = [{transform_indices = @transform_0, window_bounds = array<i64: 1, 512>}, {transform_indices = @transform_1, window_bounds = array<i64: 1, 512>}]} {
    %c0 = arith.constant 0 : index
    %c0_0 = arith.constant 0 : index
    %0 = vector.load %arg1[%c0, %c0_0] : memref<1x512xf32, #tpu.memory_space<vmem>>, vector<1x512xf32>
    %c0_1 = arith.constant 0 : index
    %c0_2 = arith.constant 0 : index
    %1 = vector.load %arg2[%c0_1, %c0_2] : memref<1x512xf32, #tpu.memory_space<vmem>>, vector<1x512xf32>
    tpu.vector_store %arg2[%c0_1, %c0_2], %0 {strides = array<i32>} : memref<1x512xf32, #tpu.memory_space<vmem>>, vector<1x512xf32>,
    return
  }
  func.func @transform_0(%arg0: i32) -> (i32, i32) {
    %c0_i32 = arith.constant 0 : i32
    %c0_i32_0 = arith.constant 0 : i32
    return %arg0, %c0_i32 : i32, i32
  }
  func.func @transform_1(%arg0: i32) -> (i32, i32) {
    %c0_i32 = arith.constant 0 : i32
    %c0_i32_0 = arith.constant 0 : i32
    return %arg0, %c0_i32 : i32, i32
  }
}

</mosaic_0001>

<llo_original>
// kernel: tpu_custom_call.1
$region0: #{tpu_custom_call.1}
  #allocation0 [shape = 'u32[]', space=smem, size = 0x4, offset = 0x4, fixed_abs, tag = 'smem constant byte address 0x4 - core index']
  #allocation1 [shape = 'u32[144,128]{1,0:T(1,128)}', space=vmem, size = 0x12000, scoped, tag = 'internal scratch']
  %s0 = inlined_call_operand.hbm [shape: f32[1,512], index: 0, kind: input, shape index: {}]
  %s1 = inlined_call_operand.hbm [shape: f32[1,512], index: 1, kind: output, shape index: {}]
  %s2 = sld [smem:[#allocation0]]
  $region18: #{tpu_custom_call.1} parent=0
    _
  %s4 = ssub.s32 1, %s2
  %s5 = scalar_select 0, %s4, %s2
  $region1: #{tpu_custom_call.1} parent=0
    #allocation2 [shape = 'u8[2048]{0}', space=vmem, size = 0x800, scoped, tag = 'input window, operand 0, single buffered']
    #allocation3 [shape = 's32[1]{0}', space=sflag, size = 0x4, scoped, tag = 'scoped memory for tpu_custom_call.1']
    #allocation4 [shape = 's32[1]{0}', space=sflag, size = 0x4, scoped, tag = 'scoped memory for tpu_custom_call.1']
    #allocation5 [shape = 'u8[2048]{0}', space=vmem, size = 0x800, scoped, tag = 'output window, operand 0, single buffered']
    %6 = vsyncpa [#allocation3], 0
    %7 = vsyncpa [#allocation4], 0
    // Predicated region
    $region2: #{tpu_custom_call.1} parent=1 // pred_check
      _
    $region3: #{tpu_custom_call.1} parent=1 // pred_check_branch
      %9 = sbr.rel (0) target = $region5
    $region4: #{tpu_custom_call.1} parent=1 // pred_region
      %s11 = ssub.s32 64, 64
      %12 = vsyncadd [#allocation3], %s11
      %s14 = sshll.u32 [#allocation2], 4
      %s15 = int_to_ptr.vmem [resolvable:$true] %s14
      %17 = dma.hbm_to_vmem [thread:$0]  %s0, 64, %s15, [#allocation3]
    $region5: #{tpu_custom_call.1} parent=1 // pred_fallthru
      _
    // Predicated region
    $region6: #{tpu_custom_call.1} parent=1 // pred_check
      _
    $region7: #{tpu_custom_call.1} parent=1 // pred_check_branch
      %19 = sbr.rel (0) target = $region9
    $region8: #{tpu_custom_call.1} parent=1 // pred_region
      %20 = dma.done [#allocation3], 64
    $region9: #{tpu_custom_call.1} parent=1 // pred_fallthru
      _
    %v21 = vld [vmem:[#allocation2] sm:$0xf]
    %v22 = vlaneseq
    %vm23 = vcmp.ge.s32.totalorder %v22, 0
    %vm24 = vcmp.lt.s32.totalorder %v22, 512
    %vm25 = vmand %vm23, %vm24
    %26 = vst.msk [vmem:[#allocation5] sm:$0xf] %vm25, %v21
    // Predicated region
    $region10: #{tpu_custom_call.1} parent=1 // pred_check
      _
    $region11: #{tpu_custom_call.1} parent=1 // pred_check_branch
      %28 = sbr.rel (0) target = $region13
    $region12: #{tpu_custom_call.1} parent=1 // pred_region
      %s30 = ssub.s32 64, 64
      %31 = vsyncadd [#allocation4], %s30
      %s33 = sshll.u32 [#allocation5], 4
      %s34 = int_to_ptr.vmem [resolvable:$true] %s33
      %36 = dma.vmem_to_hbm [thread:$0]  %s34, 64, %s1, [#allocation4]
    $region13: #{tpu_custom_call.1} parent=1 // pred_fallthru
      _
    // Predicated region
    $region14: #{tpu_custom_call.1} parent=1 // pred_check
      _
    $region15: #{tpu_custom_call.1} parent=1 // pred_check_branch
      %38 = sbr.rel (0) target = $region17
    $region16: #{tpu_custom_call.1} parent=1 // pred_region
      %39 = dma.done [#allocation4], 64
    $region17: #{tpu_custom_call.1} parent=1 // pred_fallthru
      _
    %40 = vsyncpa [#allocation3], 1
    %41 = vsyncpa [#allocation4], 1

</llo_original>
